<compile_context>
chip_gen: v5e
topology: v5e:2x2
jax: 0.10.0
libtpu: 0.0.40
codegen_flags: <defaults>
</compile_context>

<pallas_src>
import functools

import jax
import jax.numpy as jnp
from jax.experimental import pallas as pl
from jax.experimental.pallas import tpu as pltpu


def _combo_kernel(x_ref, y_ref, bce_out, dice_out, bce_acc, num_acc, den_acc,
                  *, n_rows, n_cols, epsilon, mask_rows, mask_cols):
    r = pl.program_id(0)                      # row-tile index ("parallel")
    c = pl.program_id(1)                      # column-tile index (reduction)
    tr, tc = x_ref.shape

    x = x_ref[...].astype(jnp.float32)
    y = y_ref[...].astype(jnp.float32)

    mask = None
    if mask_rows or mask_cols:
        row_ok = (r * tr + jax.lax.broadcasted_iota(jnp.int32, (tr, 1), 0)) < n_rows
        col_ok = (c * tc + jax.lax.broadcasted_iota(jnp.int32, (1, tc), 1)) < n_cols
        if mask_rows and mask_cols:
            mask = jnp.logical_and(row_ok, col_ok)
        elif mask_rows:
            mask = row_ok
        else:
            mask = col_ok
        # Zero the ragged/out-of-bounds region BEFORE the transcendentals so
        # undefined block contents cannot produce inf/NaN.
        x = jnp.where(mask, x, 0.0)
        y = jnp.where(mask, y, 0.0)

    # Numerically stable BCE-with-logits (matches torch.nn.BCEWithLogitsLoss):
    #   max(x, 0) - x*y + log1p(exp(-|x|))
    e = jnp.exp(-jnp.abs(x))                           # single exp, reused below
    bce = jnp.maximum(x, 0.0) - x * y + jnp.log1p(e)
    inv = 1.0 / (1.0 + e)
    probs = jnp.where(x >= 0.0, inv, e * inv)          # sigmoid(x) w/o a 2nd exp

    if mask is not None:
        # x==0, y==0 in the padded region still gives bce=log(2), probs=0.5,
        # which are NOT neutral for the sums -> mask the contributions too.
        bce = jnp.where(mask, bce, 0.0)
        probs = jnp.where(mask, probs, 0.0)

    # Per-row (cross-lane) partial sums; accumulated across column tiles.
    bce_rows = jnp.sum(bce, axis=1, keepdims=True)        # (tr, 1)
    num_rows = jnp.sum(probs * y, axis=1, keepdims=True)  # (tr, 1) sum(p*y)
    den_rows = jnp.sum(probs + y, axis=1, keepdims=True)  # (tr, 1) sum(p)+sum(y)

    @pl.when(c == 0)
    def _init():
        bce_acc[...] = jnp.zeros_like(bce_acc)
        num_acc[...] = jnp.zeros_like(num_acc)
        den_acc[...] = jnp.zeros_like(den_acc)

    bce_acc[...] += bce_rows
    num_acc[...] += num_rows
    den_acc[...] += den_rows

    @pl.when(c == pl.num_programs(1) - 1)
    def _finalize():
        # Exact division (no approx reciprocal) — feeds the loss directly.
        ratio = (2.0 * num_acc[...] + epsilon) / (den_acc[...] + epsilon)  # (tr,1)
        if mask_rows:
            row_ok = (r * tr
                      + jax.lax.broadcasted_iota(jnp.int32, (tr, 1), 0)) < n_rows
            ratio = jnp.where(row_ok, ratio, 0.0)
        # Single cross-sublane reduction per row tile.
        bce_out[0] = jnp.sum(bce_acc[...], keepdims=True)   # (1, 1)
        dice_out[0] = jnp.sum(ratio, keepdims=True)          # (1, 1)


def _choose_tiles(rows, cols, block_rows=None, block_cols=None):
    """Pick (tile_rows, tile_cols).

    Target ~2 MiB of f32 per input tile: big enough to amortize the
    ~0.35 us/step grid overhead and approach the HBM roofline, small enough
    that 2 inputs x 2 pipeline buffers + temporaries fit VMEM on v5e/v6e/v7x.
    """
    elem_budget = (2 * 1024 * 1024) // 4            # f32 elements per input tile
    if block_cols is not None:
        tc = min(block_cols, cols)
    elif cols * 8 <= elem_budget:
        tc = cols                                    # whole spatial dim per tile
    else:
        tc = min(cols, max(128, (elem_budget // 8) // 128 * 128))
    if block_rows is not None:
        tr = min(block_rows, rows)
    else:
        tr = min(rows, max(8, (elem_budget // tc) // 8 * 8))
        tr = min(tr, 1024)                           # keep (tr, 1) scratch small
    return tr, tc


def combo_loss(logits, targets, weight=0.5, epsilon=1e-6,
               block_rows=None, block_cols=None,
               downcast_binary_targets=False):
    """ComboLoss = weight * BCEWithLogits(mean) + (1 - weight) * DiceLoss."""
    assert logits.shape == targets.shape
    B, C, H, W = logits.shape
    rows, cols = B * C, H * W

    x = logits.reshape(rows, cols)
    y = targets.reshape(rows, cols)
    if downcast_binary_targets:
        # Lossless for hard 0/1 masks; halves HBM read traffic for the targets.
        y = y.astype(jnp.bfloat16)

    tr, tc = _choose_tiles(rows, cols, block_rows, block_cols)
    r_tiles = pl.cdiv(rows, tr)
    c_tiles = pl.cdiv(cols, tc)

    kernel = functools.partial(
        _combo_kernel, n_rows=rows, n_cols=cols, epsilon=float(epsilon),
        mask_rows=(rows % tr) != 0, mask_cols=(cols % tc) != 0)

    bce_parts, dice_parts = pl.pallas_call(
        kernel,
        out_shape=(jax.ShapeDtypeStruct((r_tiles, 1, 1), jnp.float32),
                   jax.ShapeDtypeStruct((r_tiles, 1, 1), jnp.float32)),
        grid_spec=pltpu.PrefetchScalarGridSpec(
            num_scalar_prefetch=0,
            grid=(r_tiles, c_tiles),
            in_specs=[pl.BlockSpec((tr, tc), lambda i, j: (i, j)),
                      pl.BlockSpec((tr, tc), lambda i, j: (i, j))],
            out_specs=[pl.BlockSpec((1, 1, 1), lambda i, j: (i, 0, 0)),
                       pl.BlockSpec((1, 1, 1), lambda i, j: (i, 0, 0))],
            scratch_shapes=[pltpu.VMEM((tr, 1), jnp.float32),   # BCE row sums
                            pltpu.VMEM((tr, 1), jnp.float32),   # sum(p*y) rows
                            pltpu.VMEM((tr, 1), jnp.float32)],  # sum(p)+sum(y)
        ),
        compiler_params=pltpu.CompilerParams(
            dimension_semantics=("parallel", "arbitrary"),
            vmem_limit_bytes=40 * 1024 * 1024),
    )(x, y)

    # Tiny final combine on the per-row-tile partials.
    bce_mean = jnp.sum(bce_parts) / float(rows * cols)
    dice_loss = 1.0 - jnp.sum(dice_parts) / float(rows)
    return weight * bce_mean + (1.0 - weight) * dice_loss


def _reference_combo_loss(logits, targets, weight=0.5, epsilon=1e-6):
    bce = jnp.mean(jnp.maximum(logits, 0.0) - logits * targets
                   + jnp.log1p(jnp.exp(-jnp.abs(logits))))
    p = jax.nn.sigmoid(logits)
    num = 2.0 * jnp.sum(p * targets, axis=(2, 3)) + epsilon
    den = jnp.sum(p, axis=(2, 3)) + jnp.sum(targets, axis=(2, 3)) + epsilon
    dice = 1.0 - jnp.mean(num / den)
    return weight * bce + (1.0 - weight) * dice


if __name__ == "__main__":
    key = jax.random.PRNGKey(0)
    k1, k2, k3, k4 = jax.random.split(key, 4)

    # Case 1: small shape implied by the module (exact tiling, single step).
    B, C, H, W = 2, 4, 16, 16
    logits = jax.random.normal(k1, (B, C, H, W), dtype=jnp.float32)
    targets = jax.random.bernoulli(k2, 0.5, (B, C, H, W)).astype(jnp.float32)
    loss = jax.block_until_ready(combo_loss(logits, targets))
    ref = jax.block_until_ready(_reference_combo_loss(logits, targets))
    assert jnp.isfinite(loss), "non-finite loss"
    assert abs(float(loss) - float(ref)) < 1e-5, (float(loss), float(ref))

    # Case 2: ragged row and column tiles — exercises the in-kernel masks,
    # the multi-step column reduction, multiple parallel row tiles, and the
    # optional bf16 target path (lossless for hard 0/1 labels).
    B, C, H, W = 3, 4, 9, 15
    logits2 = jax.random.normal(k3, (B, C, H, W), dtype=jnp.float32)
    targets2 = jax.random.bernoulli(k4, 0.5, (B, C, H, W)).astype(jnp.float32)
    loss2 = jax.block_until_ready(
        combo_loss(logits2, targets2, block_rows=8, block_cols=128,
                   downcast_binary_targets=True))
    ref2 = jax.block_until_ready(_reference_combo_loss(logits2, targets2))
    assert jnp.isfinite(loss2), "non-finite loss (ragged)"
    assert abs(float(loss2) - float(ref2)) < 1e-5, (float(loss2), float(ref2))

    print("KERNEL_OK")
</pallas_src>

<mosaic_0001>
module attributes {stable_mosaic.version = 11 : i64} {
  func.func @_combo_kernel(%arg0: i32, %arg1: i32, %arg2: memref<8x256xf32, #tpu.memory_space<vmem>>, %arg3: memref<8x256xf32, #tpu.memory_space<vmem>>, %arg4: memref<1x1x1xf32, #tpu.memory_space<vmem>>, %arg5: memref<1x1x1xf32, #tpu.memory_space<vmem>>, %arg6: memref<8x1xf32, #tpu.memory_space<vmem>>, %arg7: memref<8x1xf32, #tpu.memory_space<vmem>>, %arg8: memref<8x1xf32, #tpu.memory_space<vmem>>) attributes {dimension_semantics = [#tpu.dimension_semantics<parallel>, #tpu.dimension_semantics<arbitrary>], iteration_bounds = array<i64: 1, 1>, scalar_prefetch = 0 : i64, scratch_operands = 3 : i64, tpu.core_type = #tpu.core_type<tc>, window_params = [{transform_indices = @transform_0, window_bounds = array<i64: 8, 256>}, {transform_indices = @transform_1, window_bounds = array<i64: 8, 256>}, {transform_indices = @transform_2, window_bounds = array<i64: 1, 1, 1>}, {transform_indices = @transform_3, window_bounds = array<i64: 1, 1, 1>}]} {
    %c0 = arith.constant 0 : index
    %c0_0 = arith.constant 0 : index
    %0 = vector.load %arg2[%c0, %c0_0] : memref<8x256xf32, #tpu.memory_space<vmem>>, vector<8x256xf32>
    %c0_1 = arith.constant 0 : index
    %c0_2 = arith.constant 0 : index
    %1 = vector.load %arg3[%c0_1, %c0_2] : memref<8x256xf32, #tpu.memory_space<vmem>>, vector<8x256xf32>
    %2 = math.absf %0 : vector<8x256xf32>
    %cst = arith.constant 0.000000e+00 : f32
    %3 = vector.broadcast %cst : f32 to vector<8x256xf32>
    %4 = arith.subf %3, %2 : vector<8x256xf32>
    %5 = math.exp %4 : vector<8x256xf32>
    %cst_3 = arith.constant 0.000000e+00 : f32
    %6 = vector.broadcast %cst_3 : f32 to vector<8x256xf32>
    %7 = arith.maximumf %0, %6 : vector<8x256xf32>
    %8 = arith.mulf %0, %1 : vector<8x256xf32>
    %9 = arith.subf %7, %8 : vector<8x256xf32>
    %10 = math.log1p %5 : vector<8x256xf32>
    %11 = arith.addf %9, %10 : vector<8x256xf32>
    %cst_4 = arith.constant 1.000000e+00 : f32
    %12 = vector.broadcast %cst_4 : f32 to vector<8x256xf32>
    %13 = arith.addf %12, %5 : vector<8x256xf32>
    %cst_5 = arith.constant 1.000000e+00 : f32
    %14 = vector.broadcast %cst_5 : f32 to vector<8x256xf32>
    %15 = arith.divf %14, %13 : vector<8x256xf32>
    %cst_6 = arith.constant 0.000000e+00 : f32
    %16 = vector.broadcast %cst_6 : f32 to vector<8x256xf32>
    %17 = arith.cmpf oge, %0, %16 : vector<8x256xf32>
    %18 = arith.mulf %5, %15 : vector<8x256xf32>
    %19 = arith.select %17, %15, %18 : vector<8x256xi1>, vector<8x256xf32>
    %cst_7 = arith.constant dense<0.000000e+00> : vector<8xf32>
    %20 = vector.multi_reduction <add>, %11, %cst_7 [1] : vector<8x256xf32> to vector<8xf32>
    %21 = vector.shape_cast %20 : vector<8xf32> to vector<8x1xf32>
    %22 = arith.mulf %19, %1 : vector<8x256xf32>
    %cst_8 = arith.constant dense<0.000000e+00> : vector<8xf32>
    %23 = vector.multi_reduction <add>, %22, %cst_8 [1] : vector<8x256xf32> to vector<8xf32>
    %24 = vector.shape_cast %23 : vector<8xf32> to vector<8x1xf32>
    %25 = arith.addf %19, %1 : vector<8x256xf32>
    %cst_9 = arith.constant dense<0.000000e+00> : vector<8xf32>
    %26 = vector.multi_reduction <add>, %25, %cst_9 [1] : vector<8x256xf32> to vector<8xf32>
    %27 = vector.shape_cast %26 : vector<8xf32> to vector<8x1xf32>
    %c0_i32 = arith.constant 0 : i32
    %28 = arith.cmpi eq, %arg1, %c0_i32 : i32
    %29 = arith.extui %28 : i1 to i32
    %c0_i32_10 = arith.constant 0 : i32
    %30 = arith.cmpi ne, %29, %c0_i32_10 : i32
    scf.if %30 {
      %cst_25 = arith.constant 0.000000e+00 : f32
      %43 = vector.broadcast %cst_25 : f32 to vector<8x1xf32>
      %c0_26 = arith.constant 0 : index
      %c0_27 = arith.constant 0 : index
      %44 = vector.load %arg6[%c0_26, %c0_27] : memref<8x1xf32, #tpu.memory_space<vmem>>, vector<8x1xf32>
      tpu.vector_store %arg6[%c0_26, %c0_27], %43 {strides = array<i32>} : memref<8x1xf32, #tpu.memory_space<vmem>>, vector<8x1xf32>,
      %cst_28 = arith.constant 0.000000e+00 : f32
      %45 = vector.broadcast %cst_28 : f32 to vector<8x1xf32>
      %c0_29 = arith.constant 0 : index
      %c0_30 = arith.constant 0 : index
      %46 = vector.load %arg7[%c0_29, %c0_30] : memref<8x1xf32, #tpu.memory_space<vmem>>, vector<8x1xf32>
      tpu.vector_store %arg7[%c0_29, %c0_30], %45 {strides = array<i32>} : memref<8x1xf32, #tpu.memory_space<vmem>>, vector<8x1xf32>,
      %cst_31 = arith.constant 0.000000e+00 : f32
      %47 = vector.broadcast %cst_31 : f32 to vector<8x1xf32>
      %c0_32 = arith.constant 0 : index
      %c0_33 = arith.constant 0 : index
      %48 = vector.load %arg8[%c0_32, %c0_33] : memref<8x1xf32, #tpu.memory_space<vmem>>, vector<8x1xf32>
      tpu.vector_store %arg8[%c0_32, %c0_33], %47 {strides = array<i32>} : memref<8x1xf32, #tpu.memory_space<vmem>>, vector<8x1xf32>,
    } else {
    }
    %c0_11 = arith.constant 0 : index
    %c0_12 = arith.constant 0 : index
    %31 = vector.load %arg6[%c0_11, %c0_12] : memref<8x1xf32, #tpu.memory_space<vmem>>, vector<8x1xf32>
    %32 = arith.addf %31, %21 : vector<8x1xf32>
    %c0_13 = arith.constant 0 : index
    %c0_14 = arith.constant 0 : index
    %33 = vector.load %arg6[%c0_13, %c0_14] : memref<8x1xf32, #tpu.memory_space<vmem>>, vector<8x1xf32>
    tpu.vector_store %arg6[%c0_13, %c0_14], %32 {strides = array<i32>} : memref<8x1xf32, #tpu.memory_space<vmem>>, vector<8x1xf32>,
    %c0_15 = arith.constant 0 : index
    %c0_16 = arith.constant 0 : index
    %34 = vector.load %arg7[%c0_15, %c0_16] : memref<8x1xf32, #tpu.memory_space<vmem>>, vector<8x1xf32>
    %35 = arith.addf %34, %24 : vector<8x1xf32>
    %c0_17 = arith.constant 0 : index
    %c0_18 = arith.constant 0 : index
    %36 = vector.load %arg7[%c0_17, %c0_18] : memref<8x1xf32, #tpu.memory_space<vmem>>, vector<8x1xf32>
    tpu.vector_store %arg7[%c0_17, %c0_18], %35 {strides = array<i32>} : memref<8x1xf32, #tpu.memory_space<vmem>>, vector<8x1xf32>,
    %c0_19 = arith.constant 0 : index
    %c0_20 = arith.constant 0 : index
    %37 = vector.load %arg8[%c0_19, %c0_20] : memref<8x1xf32, #tpu.memory_space<vmem>>, vector<8x1xf32>
    %38 = arith.addf %37, %27 : vector<8x1xf32>
    %c0_21 = arith.constant 0 : index
    %c0_22 = arith.constant 0 : index
    %39 = vector.load %arg8[%c0_21, %c0_22] : memref<8x1xf32, #tpu.memory_space<vmem>>, vector<8x1xf32>
    tpu.vector_store %arg8[%c0_21, %c0_22], %38 {strides = array<i32>} : memref<8x1xf32, #tpu.memory_space<vmem>>, vector<8x1xf32>,
    %c0_i32_23 = arith.constant 0 : i32
    %40 = arith.cmpi eq, %arg1, %c0_i32_23 : i32
    %41 = arith.extui %40 : i1 to i32
    %c0_i32_24 = arith.constant 0 : i32
    %42 = arith.cmpi ne, %41, %c0_i32_24 : i32
    scf.if %42 {
      %c0_25 = arith.constant 0 : index
      %c0_26 = arith.constant 0 : index
      %43 = vector.load %arg7[%c0_25, %c0_26] : memref<8x1xf32, #tpu.memory_space<vmem>>, vector<8x1xf32>
      %cst_27 = arith.constant 2.000000e+00 : f32
      %44 = vector.broadcast %cst_27 : f32 to vector<8x1xf32>
      %45 = arith.mulf %44, %43 : vector<8x1xf32>
      %cst_28 = arith.constant 9.99999997E-7 : f32
      %46 = vector.broadcast %cst_28 : f32 to vector<8x1xf32>
      %47 = arith.addf %45, %46 : vector<8x1xf32>
      %c0_29 = arith.constant 0 : index
      %c0_30 = arith.constant 0 : index
      %48 = vector.load %arg8[%c0_29, %c0_30] : memref<8x1xf32, #tpu.memory_space<vmem>>, vector<8x1xf32>
      %cst_31 = arith.constant 9.99999997E-7 : f32
      %49 = vector.broadcast %cst_31 : f32 to vector<8x1xf32>
      %50 = arith.addf %48, %49 : vector<8x1xf32>
      %51 = arith.divf %47, %50 : vector<8x1xf32>
      %c0_32 = arith.constant 0 : index
      %c0_33 = arith.constant 0 : index
      %52 = vector.load %arg6[%c0_32, %c0_33] : memref<8x1xf32, #tpu.memory_space<vmem>>, vector<8x1xf32>
      %53 = vector.shape_cast %52 : vector<8x1xf32> to vector<1x8x1xf32>
      %cst_34 = arith.constant dense<0.000000e+00> : vector<1xf32>
      %54 = vector.multi_reduction <add>, %53, %cst_34 [1, 2] : vector<1x8x1xf32> to vector<1xf32>
      %55 = vector.shape_cast %54 : vector<1xf32> to vector<1x1x1xf32>
      %56 = vector.extract %55[0, 0, 0] : f32 from vector<1x1x1xf32>
      %57 = vector.broadcast %56 : f32 to vector<1x1xf32>
      %c0_35 = arith.constant 0 : index
      %c0_36 = arith.constant 0 : index
      %c0_37 = arith.constant 0 : index
      %58 = vector.load %arg4[%c0_35, %c0_36, %c0_37] : memref<1x1x1xf32, #tpu.memory_space<vmem>>, vector<1x1x1xf32>
      %59 = vector.shape_cast %58 : vector<1x1x1xf32> to vector<1x1xf32>
      %60 = vector.shape_cast %57 : vector<1x1xf32> to vector<1x1x1xf32>
      tpu.vector_store %arg4[%c0_35, %c0_36, %c0_37], %60 {strides = array<i32>} : memref<1x1x1xf32, #tpu.memory_space<vmem>>, vector<1x1x1xf32>,
      %61 = vector.shape_cast %51 : vector<8x1xf32> to vector<1x8x1xf32>
      %cst_38 = arith.constant dense<0.000000e+00> : vector<1xf32>
      %62 = vector.multi_reduction <add>, %61, %cst_38 [1, 2] : vector<1x8x1xf32> to vector<1xf32>
      %63 = vector.shape_cast %62 : vector<1xf32> to vector<1x1x1xf32>
      %64 = vector.extract %63[0, 0, 0] : f32 from vector<1x1x1xf32>
      %65 = vector.broadcast %64 : f32 to vector<1x1xf32>
      %c0_39 = arith.constant 0 : index
      %c0_40 = arith.constant 0 : index
      %c0_41 = arith.constant 0 : index
      %66 = vector.load %arg5[%c0_39, %c0_40, %c0_41] : memref<1x1x1xf32, #tpu.memory_space<vmem>>, vector<1x1x1xf32>
      %67 = vector.shape_cast %66 : vector<1x1x1xf32> to vector<1x1xf32>
      %68 = vector.shape_cast %65 : vector<1x1xf32> to vector<1x1x1xf32>
      tpu.vector_store %arg5[%c0_39, %c0_40, %c0_41], %68 {strides = array<i32>} : memref<1x1x1xf32, #tpu.memory_space<vmem>>, vector<1x1x1xf32>,
    } else {
    }
    return
  }
  func.func @transform_0(%arg0: i32, %arg1: i32) -> (i32, i32) {
    %c0_i32 = arith.constant 0 : i32
    return %arg0, %arg1 : i32, i32
  }
  func.func @transform_1(%arg0: i32, %arg1: i32) -> (i32, i32) {
    %c0_i32 = arith.constant 0 : i32
    return %arg0, %arg1 : i32, i32
  }
  func.func @transform_2(%arg0: i32, %arg1: i32) -> (i32, i32, i32) {
    %c0_i32 = arith.constant 0 : i32
    %c0_i32_0 = arith.constant 0 : i32
    %c0_i32_1 = arith.constant 0 : i32
    return %arg0, %c0_i32, %c0_i32_0 : i32, i32, i32
  }
  func.func @transform_3(%arg0: i32, %arg1: i32) -> (i32, i32, i32) {
    %c0_i32 = arith.constant 0 : i32
    %c0_i32_0 = arith.constant 0 : i32
    %c0_i32_1 = arith.constant 0 : i32
    return %arg0, %c0_i32, %c0_i32_0 : i32, i32, i32
  }
}

</mosaic_0001>

<llo_original>
// kernel: tpu_custom_call.1
$region0: #{tpu_custom_call.1}
  #allocation0 [shape = 'u32[]', space=smem, size = 0x4, offset = 0x4, fixed_abs, tag = 'smem constant byte address 0x4 - core index']
  #allocation1 [shape = 'u32[72,128]{1,0:T(1,128)}', space=vmem, size = 0x9000, scoped, tag = 'internal scratch']
  #allocation2 [shape = 'f32[8,1]{1,0:T(8,128)}', space=vmem, size = 0x1000, scoped, tag = 'scratch operand']
  #allocation3 [shape = 'f32[8,1]{1,0:T(8,128)}', space=vmem, size = 0x1000, scoped, tag = 'scratch operand']
  #allocation4 [shape = 'f32[8,1]{1,0:T(8,128)}', space=vmem, size = 0x1000, scoped, tag = 'scratch operand']
  %s0 = inlined_call_operand.hbm [shape: f32[8,256], index: 0, kind: input, shape index: {}]
  %s1 = inlined_call_operand.hbm [shape: f32[8,256], index: 1, kind: input, shape index: {}]
  %s2 = inlined_call_operand.hbm [shape: f32[1,1,1], index: 2, kind: output, shape index: {0}]
  %s3 = inlined_call_operand.hbm [shape: f32[1,1,1], index: 3, kind: output, shape index: {1}]
  %4 = xla_tuple %s2, %s3
  %s5 = sld [smem:[#allocation0]]
  $region42: #{tpu_custom_call.1} parent=0
    _
  %s7 = ssub.s32 1, %s5
  %s8 = scalar_select 0, %s7, %s5
  $region1: #{tpu_custom_call.1} parent=0
    #allocation5 [shape = 'u8[8192]{0}', space=vmem, size = 0x2000, scoped, tag = 'input window, operand 0, single buffered']
    #allocation6 [shape = 's32[1]{0}', space=sflag, size = 0x4, scoped, tag = 'scoped memory for tpu_custom_call.1']
    #allocation7 [shape = 's32[1]{0}', space=sflag, size = 0x4, scoped, tag = 'scoped memory for tpu_custom_call.1']
    #allocation8 [shape = 'u8[8192]{0}', space=vmem, size = 0x2000, scoped, tag = 'input window, operand 1, single buffered']
    #allocation9 [shape = 's32[1]{0}', space=sflag, size = 0x4, scoped, tag = 'scoped memory for tpu_custom_call.1']
    #allocation10 [shape = 'u8[512]{0}', space=vmem, size = 0x400, scoped, tag = 'output window, operand 0, single buffered']
    #allocation11 [shape = 'u8[512]{0}', space=vmem, size = 0x400, scoped, tag = 'output window, operand 1, single buffered']
    #allocation12 [shape = 's32[1]{0}', space=sflag, size = 0x4, scoped, tag = 'scoped memory for tpu_custom_call.1']
    %9 = vsyncpa [#allocation6], 0
    %10 = vsyncpa [#allocation9], 0
    %11 = vsyncpa [#allocation7], 0
    %12 = vsyncpa [#allocation12], 0
    // Predicated region
    $region2: #{tpu_custom_call.1} parent=1 // pred_check
      _
    $region3: #{tpu_custom_call.1} parent=1 // pred_check_branch
      %14 = sbr.rel (0) target = $region5
    $region4: #{tpu_custom_call.1} parent=1 // pred_region
      %16 = vsyncadd [#allocation6], 0
      %s18 = sshll.u32 %s0, 4
      %s19 = int_to_ptr.hbm [resolvable:$true] %s18
      %s20 = sshll.u32 [#allocation5], 4
      %s21 = int_to_ptr.vmem [resolvable:$true] %s20
      %23 = dma.hbm_to_vmem [thread:$0]  %s19, 256, %s21, [#allocation6]
    $region5: #{tpu_custom_call.1} parent=1 // pred_fallthru
      _
    // Predicated region
    $region6: #{tpu_custom_call.1} parent=1 // pred_check
      _
    $region7: #{tpu_custom_call.1} parent=1 // pred_check_branch
      %25 = sbr.rel (0) target = $region9
    $region8: #{tpu_custom_call.1} parent=1 // pred_region
      %27 = vsyncadd [#allocation9], 0
      %s29 = sshll.u32 %s1, 4
      %s30 = int_to_ptr.hbm [resolvable:$true] %s29
      %s31 = sshll.u32 [#allocation8], 4
      %s32 = int_to_ptr.vmem [resolvable:$true] %s31
      %34 = dma.hbm_to_vmem [thread:$0]  %s30, 256, %s32, [#allocation9]
    $region9: #{tpu_custom_call.1} parent=1 // pred_fallthru
      _
    // Predicated region
    $region10: #{tpu_custom_call.1} parent=1 // pred_check
      _
    $region11: #{tpu_custom_call.1} parent=1 // pred_check_branch
      %36 = sbr.rel (0) target = $region13
    $region12: #{tpu_custom_call.1} parent=1 // pred_region
      %38 = dma.done [#allocation6], 256
    $region13: #{tpu_custom_call.1} parent=1 // pred_fallthru
      _
    // Predicated region
    $region14: #{tpu_custom_call.1} parent=1 // pred_check
      _
    $region15: #{tpu_custom_call.1} parent=1 // pred_check_branch
      %40 = sbr.rel (0) target = $region17
    $region16: #{tpu_custom_call.1} parent=1 // pred_region
      %42 = dma.done [#allocation9], 256
    $region17: #{tpu_custom_call.1} parent=1 // pred_fallthru
      _
    %v43 = vld [vmem:[#allocation5] sm:$0xff]
    %v44 = vld [vmem:[#allocation5 + $0x8] sm:$0xff]
    %v45 = vld [vmem:[#allocation8] sm:$0xff]
    %v46 = vld [vmem:[#allocation8 + $0x8] sm:$0xff]
    %v47 = vand.u32 2147483647, %v43
    %v48 = vand.u32 2147483647, %v44
    %v49 = vsub.f32 0.0, %v47
    %v50 = vsub.f32 0.0, %v48
    %v51 = vmul.f32 %v49, 1.442695
    %v52 = vpow.pop %v51
    %v53 = vmul.f32 %v50, 1.442695
    %v54 = vpow.pop %v53
    %v55 = vmax.f32 %v43, 0.0
    %v56 = vmax.f32 %v44, 0.0
    %v57 = vmul.f32 %v43, %v45
    %v58 = vmul.f32 %v44, %v46
    %v59 = vsub.f32 %v55, %v57
    %v60 = vsub.f32 %v56, %v58
    %v61 = vadd.f32 %v52, 1.0
    %v62 = vlog2.pop %v61
    %v63 = vmul.f32 %v62, 0.6931472
    %v64 = vmul.f32 -0.5, %v52
    %v65 = vadd.f32 %v64, 1.0
    %v66 = vmul.f32 %v65, %v52
    %v67 = vand.u32 2147483647, %v52
    %vm68 = vcmp.lt.f32.partialorder %v67, 0.0004427343
    %v69 = vsel %vm68, %v66, %v63
    %v70 = vadd.f32 %v54, 1.0
    %v71 = vlog2.pop %v70
    %v72 = vmul.f32 %v71, 0.6931472
    %v73 = vmul.f32 -0.5, %v54
    %v74 = vadd.f32 %v73, 1.0
    %v75 = vmul.f32 %v74, %v54
    %v76 = vand.u32 2147483647, %v54
    %vm77 = vcmp.lt.f32.partialorder %v76, 0.0004427343
    %v78 = vsel %vm77, %v75, %v72
    %v79 = vadd.f32 %v59, %v69
    %v80 = vadd.f32 %v60, %v78
    %v81 = vadd.f32 %v52, 1.0
    %v82 = vadd.f32 %v54, 1.0
    %v83 = vrcp.pop %v81
    %v84 = vmul.f32 %v81, %v83
    %v85 = vsub.f32 1.0, %v84
    %v86 = vmul.f32 %v83, %v85
    %v87 = vadd.f32 %v83, %v86
    %vm88 = vweird.f32 %v81
    %vm89 = vweird.f32 %v83
    %vm90 = vmor %vm88, %vm89
    %v91 = vsel %vm90, %v83, %v87
    %v92 = vand.u32 2147483647, %v81
    %vm93 = vcmp.eq.f32.partialorder %v92, 8.507059e+37
    %v94 = vand.u32 %v81, 2147483648
    %v95 = vor.u32 1.1754944e-38, %v94
    %v96 = vsel %vm93, %v95, %v91
    %v97 = vmul.f32 1.0, %v96
    %v98 = vrcp.pop %v82
    %v99 = vmul.f32 %v82, %v98
    %v100 = vsub.f32 1.0, %v99
    %v101 = vmul.f32 %v98, %v100
    %v102 = vadd.f32 %v98, %v101
    %vm103 = vweird.f32 %v82
    %vm104 = vweird.f32 %v98
    %vm105 = vmor %vm103, %vm104
    %v106 = vsel %vm105, %v98, %v102
    %v107 = vand.u32 2147483647, %v82
    %vm108 = vcmp.eq.f32.partialorder %v107, 8.507059e+37
    %v109 = vand.u32 %v82, 2147483648
    %v110 = vor.u32 1.1754944e-38, %v109
    %v111 = vsel %vm108, %v110, %v106
    %v112 = vmul.f32 1.0, %v111
    %vm113 = vcmp.ge.f32.partialorder %v43, 0.0
    %vm114 = vcmp.ge.f32.partialorder %v44, 0.0
    %v115 = vmul.f32 %v52, %v97
    %v116 = vmul.f32 %v54, %v112
    %v117 = vsel %vm113, %v97, %v115
    %v118 = vsel %vm114, %v112, %v116
    %v119 = vadd.f32 %v79, %v80
    %120 = vadd.xlane.f32.xlu0 %v119
    %v121 = vpop.xlane.xlu0 %120
    %v122 = vmul.f32 %v117, %v45
    %v123 = vmul.f32 %v118, %v46
    %v124 = vadd.f32 %v122, %v123
    %125 = vadd.xlane.f32.xlu0 %v124
    %v126 = vpop.xlane.xlu0 %125
    %v127 = vadd.f32 %v117, %v45
    %v128 = vadd.f32 %v118, %v46
    %v129 = vadd.f32 %v127, %v128
    %130 = vadd.xlane.f32.xlu0 %v129
    %v131 = vpop.xlane.xlu0 %130
    %p132 = scmp.eq.s32.totalorder 0, 0
    // Predicated region
    $region18: #{tpu_custom_call.1} parent=1 // pred_check
      %p133 = pneg %p132
    $region19: #{tpu_custom_call.1} parent=1 // pred_check_branch
      %135 = sbr.rel (%p133) target = $region21
    $region20: #{tpu_custom_call.1} parent=1 // pred_region
      %vm136 = vcmask 7168
      %137 = vst.msk [vmem:[#allocation2] sm:$0xff] %vm136, 0.0
      %138 = vst.msk [vmem:[#allocation3] sm:$0xff] %vm136, 0.0
      %139 = vst.msk [vmem:[#allocation4] sm:$0xff] %vm136, 0.0
    $region21: #{tpu_custom_call.1} parent=1 // pred_fallthru
      _
    %v140 = vld [vmem:[#allocation2] sm:$0xff]
    %v141 = vadd.f32 %v140, %v121
    %vm142 = vcmask 7168
    %143 = vst.msk [vmem:[#allocation2] sm:$0xff] %vm142, %v141
    %v144 = vld [vmem:[#allocation3] sm:$0xff]
    %v145 = vadd.f32 %v144, %v126
    %146 = vst.msk [vmem:[#allocation3] sm:$0xff] %vm142, %v145
    %v147 = vld [vmem:[#allocation4] sm:$0xff]
    %v148 = vadd.f32 %v147, %v131
    %149 = vst.msk [vmem:[#allocation4] sm:$0xff] %vm142, %v148
    // Predicated region
    $region22: #{tpu_custom_call.1} parent=1 // pred_check
      %p150 = pneg %p132
    $region23: #{tpu_custom_call.1} parent=1 // pred_check_branch
      %152 = sbr.rel (%p150) target = $region25
    $region24: #{tpu_custom_call.1} parent=1 // pred_region
      %v153 = vld [vmem:[#allocation3] sm:$0xff]
      %v154 = vmul.f32 %v153, 2.0
      %v155 = vadd.f32 %v154, 1e-06
      %v156 = vld [vmem:[#allocation4] sm:$0xff]
      %v157 = vadd.f32 %v156, 1e-06
      %v158 = vrcp.pop %v157
      %v159 = vmul.f32 %v157, %v158
      %v160 = vsub.f32 1.0, %v159
      %v161 = vmul.f32 %v158, %v160
      %v162 = vadd.f32 %v158, %v161
      %vm163 = vweird.f32 %v157
      %vm164 = vweird.f32 %v158
      %vm165 = vmor %vm163, %vm164
      %v166 = vsel %vm165, %v158, %v162
      %v167 = vand.u32 2147483647, %v157
      %vm168 = vcmp.eq.f32.partialorder %v167, 8.507059e+37
      %v169 = vand.u32 %v157, 2147483648
      %v170 = vor.u32 1.1754944e-38, %v169
      %v171 = vsel %vm168, %v170, %v166
      %v172 = vmul.f32 %v155, %v171
      %v173 = vld [vmem:[#allocation2] sm:$0xff]
      %v174 = vsel %vm142, %v173, 0.0
      %175 = vadd.xlane.f32.xlu0 %v174
      %v176 = vpop.xlane.xlu0 %175
      %v177 = vrot.slane %v176, 4
      %v178 = vadd.f32 %v176, %v177
      %v179 = vrot.slane %v178, 2
      %v180 = vadd.f32 %v178, %v179
      %v181 = vrot.slane %v180, 1
      %v182 = vadd.f32 %v180, %v181
      %s183 = vtos %v182
      %v184 = vstv %s183
      %vm185 = vcmask 0
      %186 = vst.msk [vmem:[#allocation10] sm:$0x1] %vm185, %v184
      %v187 = vsel %vm142, %v172, 0.0
      %188 = vadd.xlane.f32.xlu0 %v187
      %v189 = vpop.xlane.xlu0 %188
      %v190 = vrot.slane %v189, 4
      %v191 = vadd.f32 %v189, %v190
      %v192 = vrot.slane %v191, 2
      %v193 = vadd.f32 %v191, %v192
      %v194 = vrot.slane %v193, 1
      %v195 = vadd.f32 %v193, %v194
      %s196 = vtos %v195
      %v197 = vstv %s196
      %198 = vst.msk [vmem:[#allocation11] sm:$0x1] %vm185, %v197
    $region25: #{tpu_custom_call.1} parent=1 // pred_fallthru
      _
    // Predicated region
    $region26: #{tpu_custom_call.1} parent=1 // pred_check
      _
    $region27: #{tpu_custom_call.1} parent=1 // pred_check_branch
      %200 = sbr.rel (0) target = $region29
    $region28: #{tpu_custom_call.1} parent=1 // pred_region
      %202 = vsyncadd [#allocation7], 0
      %s204 = sshll.u32 [#allocation10], 4
      %s205 = int_to_ptr.vmem [resolvable:$true] %s204
      %s206 = sshll.u32 %s2, 4
      %s207 = int_to_ptr.hbm [resolvable:$true] %s206
      %209 = dma.vmem_to_hbm [thread:$0]  %s205, 16, %s207, [#allocation7]
    $region29: #{tpu_custom_call.1} parent=1 // pred_fallthru
      _
    // Predicated region
    $region30: #{tpu_custom_call.1} parent=1 // pred_check
      _
    $region31: #{tpu_custom_call.1} parent=1 // pred_check_branch
      %211 = sbr.rel (0) target = $region33
    $region32: #{tpu_custom_call.1} parent=1 // pred_region
      %213 = vsyncadd [#allocation12], 0
      %s215 = sshll.u32 [#allocation11], 4
      %s216 = int_to_ptr.vmem [resolvable:$true] %s215
      %s217 = sshll.u32 %s3, 4
      %s218 = int_to_ptr.hbm [resolvable:$true] %s217
      %220 = dma.vmem_to_hbm [thread:$0]  %s216, 16, %s218, [#allocation12]
    $region33: #{tpu_custom_call.1} parent=1 // pred_fallthru
      _
    // Predicated region
    $region34: #{tpu_custom_call.1} parent=1 // pred_check
      _
    $region35: #{tpu_custom_call.1} parent=1 // pred_check_branch
      %222 = sbr.rel (0) target = $region37
    $region36: #{tpu_custom_call.1} parent=1 // pred_region
      %224 = dma.done [#allocation7], 16
    $region37: #{tpu_custom_call.1} parent=1 // pred_fallthru
      _
    // Predicated region
    $region38: #{tpu_custom_call.1} parent=1 // pred_check
      _
    $region39: #{tpu_custom_call.1} parent=1 // pred_check_branch
      %226 = sbr.rel (0) target = $region41
    $region40: #{tpu_custom_call.1} parent=1 // pred_region
      %228 = dma.done [#allocation12], 16
    $region41: #{tpu_custom_call.1} parent=1 // pred_fallthru
      _
    %229 = vsyncpa [#allocation6], 1
    %230 = vsyncpa [#allocation9], 1
    %231 = vsyncpa [#allocation7], 1
    %232 = vsyncpa [#allocation12], 1

</llo_original>
